<compile_context>
chip_gen: v7x
topology: tpu7x:2x2x1
jax: 0.10.0
libtpu: 0.0.40
codegen_flags: <defaults>
</compile_context>

<pallas_src>
import functools
import math

import jax
import jax.numpy as jnp
from jax.experimental import pallas as pl
from jax.experimental.pallas import tpu as pltpu

_LANE = 128
_SUB = 8
_NC = 8          # candidate-axis chunk size (sublane multiple)


def _round_up(x, m):
    return ((x + m - 1) // m) * m


def catt_kernel(cand_ref, hist_ref, mask_ref, w1c_ref, w1h_ref, b1_ref, w2_ref,
                out_ref, cp_ref, scores_ref, *, nc):
    bt, n_p, d_p = cand_ref.shape
    h_p = hist_ref.shape[1]
    a_p = w1c_ref.shape[1]
    n_chunks = n_p // nc

    # affine1 split along its input halves: affine1([c, h]) = c@W1c^T + h@W1h^T + b1.
    cand2d = cand_ref[...].reshape(bt * n_p, d_p)                       # [bt*Np, Dp]
    cp = jnp.dot(cand2d, w1c_ref[...],
                 preferred_element_type=jnp.float32) + b1_ref[...]      # [bt*Np, Ap]
    cp_ref[...] = cp.reshape(bt, n_p, a_p)                              # stash for chunked reuse

    hist2d = hist_ref[...].reshape(bt * h_p, d_p)                       # [bt*Hp, Dp]
    hp = jnp.dot(hist2d, w1h_ref[...],
                 preferred_element_type=jnp.float32)                    # [bt*Hp, Ap]
    hp4 = hp.reshape(bt, 1, h_p, a_p)
    w2b = w2_ref[...].reshape(1, 1, 1, a_p)

    # Chunk the O(N*H*A) hidden tensor over the candidate axis: the live
    # intermediate is [bt, nc, Hp, Ap] independent of N.
    @pl.loop(0, n_chunks)
    def _(c):
        off = pl.multiple_of(c * nc, nc)
        cp_c = cp_ref[:, pl.ds(off, nc), :]                             # [bt, nc, Ap]
        hidden = jnp.maximum(cp_c.reshape(bt, nc, 1, a_p) + hp4, 0.0)   # [bt, nc, Hp, Ap]
        # NOTE: lane-reduce over Ap (XLU); if the XLU slot saturates, switch this
        # to a [bt*nc*Hp, Ap] x [Ap, 1] dot on the MXU.
        scores_ref[:, pl.ds(off, nc), :] = jnp.sum(hidden * w2b, axis=-1)

    # masked_fill + softmax over the history (lane) axis; exact normalization.
    masked = jnp.where(mask_ref[...] != 0.0, scores_ref[...],
                       jnp.float32(-1e9))                               # [bt, Np, Hp]
    m = jnp.max(masked, axis=-1, keepdims=True)
    e = jnp.exp(masked - m)
    alpha = e / jnp.sum(e, axis=-1, keepdims=True)

    out = jnp.einsum('bnh,bhd->bnd', alpha.astype(hist_ref.dtype), hist_ref[...],
                     preferred_element_type=jnp.float32)                # [bt, Np, Dp]
    out_ref[...] = out.astype(out_ref.dtype)


def _vmem_limit_bytes():
    cap = 64 * 1024 * 1024                      # conservative fallback (v7x per-core VMEM)
    try:
        cap = int(pltpu.get_tpu_info().vmem_capacity_bytes)
    except Exception:
        pass
    # Leave headroom for compiler-internal scratch: 96 MiB on 128-MiB chips
    # (v5e/v6e), 48 MiB on 64-MiB v7x cores.
    return (3 * cap) // 4


def catt_forward(candidate, history, mask, w1, b1, w2, b2=None, *,
                 batch_tile=None, matmul_dtype=jnp.bfloat16):
    """candidate [B,N,D], history [B,H,D], mask [B,H]; w1 [A,2D], b1 [A], w2 [1,A], b2 [1].

    b2 is accepted for API parity but unused: it adds the same constant to every
    attention score before the softmax, which is softmax-invariant."""
    B, N, D = candidate.shape
    _, H, _ = history.shape
    A = w1.shape[0]

    Dp = _round_up(D, _LANE)    # feature dim -> lane axis of cand/hist/output
    Ap = _round_up(A, _LANE)    # attention dim -> lane axis of hidden
    Hp = _round_up(H, _SUB)     # history dim: sublane alignment only
    Np = _round_up(N, _NC)      # candidate dim: sublane aligned + divisible by the chunk

    mm = jnp.dtype(matmul_dtype)
    isz = mm.itemsize
    osz = jnp.dtype(candidate.dtype).itemsize
    f32 = jnp.float32

    # Per-chip VMEM budget -> batch rows folded per grid step.
    vmem_limit = _vmem_limit_bytes()
    budget = int(vmem_limit * 0.65)
    per_row = (2 * (Np * Dp * isz + Hp * Dp * isz + Hp * 4 + Np * Dp * osz)  # dbl-buffered blocks
               + Np * Ap * 4 + Np * Hp * 4                                   # cp / scores scratch
               + 2 * _NC * Hp * Ap * 4 + Hp * Ap * 4                         # hidden chunk (+product), hp
               + Np * Ap * 4 + 3 * Np * Hp * 4 + Np * Dp * 4)                # cp / softmax / out temporaries
    fixed = 2 * (2 * Dp * Ap * isz + 2 * Ap * 4)                             # resident weights
    if batch_tile is None:
        bt = max(1, (budget - fixed) // per_row)
    else:
        bt = max(1, int(batch_tile))
    bt = min(bt, B)
    n_steps = pl.cdiv(B, bt)
    if B >= 2:
        n_steps = max(2, n_steps)       # >= 2 grid steps so both v7x TensorCores get work
    bt = pl.cdiv(B, n_steps)            # rebalance so batch padding is spread across steps
    Bp = n_steps * bt

    # Zero padding is exact: padded D/A weight columns are zero, padded history rows
    # are masked_fill'ed to -1e9, padded batch/candidate rows are sliced off.
    cand_p = jnp.pad(candidate.astype(mm), ((0, Bp - B), (0, Np - N), (0, Dp - D)))
    hist_p = jnp.pad(history.astype(mm), ((0, Bp - B), (0, Hp - H), (0, Dp - D)))
    mask_p = jnp.pad(mask.astype(f32), ((0, Bp - B), (0, Hp - H)))[:, None, :]

    w1c_t = jnp.pad(jnp.transpose(w1[:, :D]).astype(mm), ((0, Dp - D), (0, Ap - A)))
    w1h_t = jnp.pad(jnp.transpose(w1[:, D:]).astype(mm), ((0, Dp - D), (0, Ap - A)))
    b1_2d = jnp.pad(b1.astype(f32)[None, :], ((0, 0), (0, Ap - A)))
    w2_2d = jnp.pad(w2.reshape(1, A).astype(f32), ((0, 0), (0, Ap - A)))

    kernel = functools.partial(catt_kernel, nc=_NC)
    out_p = pl.pallas_call(
        kernel,
        out_shape=jax.ShapeDtypeStruct((Bp, Np, Dp), candidate.dtype),
        grid_spec=pltpu.PrefetchScalarGridSpec(
            num_scalar_prefetch=0,
            grid=(Bp // bt,),
            in_specs=[
                pl.BlockSpec((bt, Np, Dp), lambda i: (i, 0, 0)),   # candidate
                pl.BlockSpec((bt, Hp, Dp), lambda i: (i, 0, 0)),   # history
                pl.BlockSpec((bt, 1, Hp), lambda i: (i, 0, 0)),    # history mask
                pl.BlockSpec((Dp, Ap), lambda i: (0, 0)),          # W1 (candidate half)^T
                pl.BlockSpec((Dp, Ap), lambda i: (0, 0)),          # W1 (history half)^T
                pl.BlockSpec((1, Ap), lambda i: (0, 0)),           # b1
                pl.BlockSpec((1, Ap), lambda i: (0, 0)),           # W2
            ],
            out_specs=pl.BlockSpec((bt, Np, Dp), lambda i: (i, 0, 0)),
            scratch_shapes=[
                pltpu.VMEM((bt, Np, Ap), jnp.float32),   # cp (candidate affine1 half)
                pltpu.VMEM((bt, Np, Hp), jnp.float32),   # attention scores
            ],
        ),
        compiler_params=pltpu.CompilerParams(
            dimension_semantics=("parallel",),
            vmem_limit_bytes=int(vmem_limit),
        ),
    )(cand_p, hist_p, mask_p, w1c_t, w1h_t, b1_2d, w2_2d)

    return out_p[:B, :N, :D]


def catt_reference(candidate, history, mask, w1, b1, w2, b2):
    """Pure-JAX mirror of the PyTorch forward, for correctness checking."""
    B, N, D = candidate.shape
    H = history.shape[1]
    cand_e = jnp.broadcast_to(candidate[:, :, None, :], (B, N, H, D))
    hist_e = jnp.broadcast_to(history[:, None, :, :], (B, N, H, D))
    concat = jnp.concatenate([cand_e, hist_e], axis=3)                 # [B,N,H,2D]
    hidden = jax.nn.relu(concat @ w1.T + b1)                           # [B,N,H,A]
    a = (hidden @ w2.T + b2)[..., 0]                                   # [B,N,H]
    mask_e = jnp.broadcast_to(mask[:, None, :], (B, N, H))
    a = jnp.where(mask_e == 0, -1e9, a)
    alpha = jax.nn.softmax(a, axis=2)
    return jnp.sum(alpha[..., None] * hist_e, axis=2)                  # [B,N,D]


if __name__ == "__main__":
    def make_inputs(key, B, N, H, D, A):
        k1, k2, k3, k4, k5 = jax.random.split(key, 5)
        candidate = jax.random.normal(k1, (B, N, D), jnp.float32)
        history = jax.random.normal(k2, (B, H, D), jnp.float32)
        mask = (jax.random.uniform(k3, (B, H)) > 0.3).astype(jnp.float32)
        mask = mask.at[:, 0].set(1.0)  # at least one valid history item per user
        gain_relu = math.sqrt(2.0)     # CATT.initialize(): xavier_uniform / zero bias
        lim1 = gain_relu * math.sqrt(6.0 / (2 * D + A))
        w1 = jax.random.uniform(k4, (A, 2 * D), jnp.float32, -lim1, lim1)
        b1 = jnp.zeros((A,), jnp.float32)
        lim2 = math.sqrt(6.0 / (A + 1))
        w2 = jax.random.uniform(k5, (1, A), jnp.float32, -lim2, lim2)
        b2 = jnp.zeros((1,), jnp.float32)
        return candidate, history, mask, w1, b1, w2, b2

    kA, kB = jax.random.split(jax.random.PRNGKey(0))

    # Case 1: B=2, N=4, H=8, D=32, A=16 (single candidate chunk).
    cand, hist, msk, w1, b1, w2, b2 = make_inputs(kA, 2, 4, 8, 32, 16)
    ref = catt_reference(cand, hist, msk, w1, b1, w2, b2)

    out_f32 = jax.block_until_ready(
        catt_forward(cand, hist, msk, w1, b1, w2, b2, matmul_dtype=jnp.float32))
    assert out_f32.shape == ref.shape
    assert jnp.allclose(out_f32, ref, atol=2e-4, rtol=2e-4), "f32 mismatch vs reference"

    out_bf16 = jax.block_until_ready(
        catt_forward(cand, hist, msk, w1, b1, w2, b2, matmul_dtype=jnp.bfloat16))
    # Compare against the reference evaluated on bf16-quantized inputs so the check
    # isolates kernel error from the (intentional) bf16 input quantization.
    q = lambda x: x.astype(jnp.bfloat16).astype(jnp.float32)
    ref_q = catt_reference(q(cand), q(hist), msk, q(w1), b1, w2, b2)
    assert jnp.allclose(out_bf16, ref_q, atol=1e-2, rtol=1e-2), "bf16 mismatch vs reference"

    # Case 2: odd batch, non-aligned dims, multiple candidate chunks (Np=24 -> 3 chunks).
    cand, hist, msk, w1, b1, w2, b2 = make_inputs(kB, 3, 20, 10, 40, 20)
    ref = catt_reference(cand, hist, msk, w1, b1, w2, b2)
    out2 = jax.block_until_ready(
        catt_forward(cand, hist, msk, w1, b1, w2, b2, matmul_dtype=jnp.float32))
    assert jnp.allclose(out2, ref, atol=2e-4, rtol=2e-4), "chunked-path mismatch"

    print("KERNEL_OK")
</pallas_src>

<mosaic_0001>
module attributes {stable_mosaic.version = 11 : i64} {
  func.func @catt_kernel(%arg0: i32, %arg1: memref<1x8x128xf32, #tpu.memory_space<vmem>>, %arg2: memref<1x8x128xf32, #tpu.memory_space<vmem>>, %arg3: memref<1x1x8xf32, #tpu.memory_space<vmem>>, %arg4: memref<128x128xf32, #tpu.memory_space<vmem>>, %arg5: memref<128x128xf32, #tpu.memory_space<vmem>>, %arg6: memref<1x128xf32, #tpu.memory_space<vmem>>, %arg7: memref<1x128xf32, #tpu.memory_space<vmem>>, %arg8: memref<1x8x128xf32, #tpu.memory_space<vmem>>, %arg9: memref<1x8x128xf32, #tpu.memory_space<vmem>>, %arg10: memref<1x8x8xf32, #tpu.memory_space<vmem>>) attributes {dimension_semantics = [#tpu.dimension_semantics<parallel>], iteration_bounds = array<i64: 2>, scalar_prefetch = 0 : i64, scratch_operands = 2 : i64, tpu.core_type = #tpu.core_type<tc>, window_params = [{transform_indices = @transform_0, window_bounds = array<i64: 1, 8, 128>}, {transform_indices = @transform_1, window_bounds = array<i64: 1, 8, 128>}, {transform_indices = @transform_2, window_bounds = array<i64: 1, 1, 8>}, {pipeline_mode = #tpu.pipeline_mode<synchronous>, transform_indices = @transform_3, window_bounds = array<i64: 128, 128>}, {pipeline_mode = #tpu.pipeline_mode<synchronous>, transform_indices = @transform_4, window_bounds = array<i64: 128, 128>}, {pipeline_mode = #tpu.pipeline_mode<synchronous>, transform_indices = @transform_5, window_bounds = array<i64: 1, 128>}, {pipeline_mode = #tpu.pipeline_mode<synchronous>, transform_indices = @transform_6, window_bounds = array<i64: 1, 128>}, {transform_indices = @transform_7, window_bounds = array<i64: 1, 8, 128>}]} {
    %c0 = arith.constant 0 : index
    %c0_0 = arith.constant 0 : index
    %c0_1 = arith.constant 0 : index
    %0 = vector.load %arg1[%c0, %c0_0, %c0_1] : memref<1x8x128xf32, #tpu.memory_space<vmem>>, vector<1x8x128xf32>
    %1 = vector.shape_cast %0 : vector<1x8x128xf32> to vector<8x128xf32>
    %c0_2 = arith.constant 0 : index
    %c0_3 = arith.constant 0 : index
    %2 = vector.load %arg4[%c0_2, %c0_3] : memref<128x128xf32, #tpu.memory_space<vmem>>, vector<128x128xf32>
    %cst = arith.constant dense<0.000000e+00> : vector<8x128xf32>
    %3 = tpu.matmul %1, %2, %cst {dimension_numbers = #tpu.dot_dimension_numbers<[1], [0], [0], [1], [0, 0, 1, 1], [], []>} : vector<8x128xf32>, vector<128x128xf32>, vector<8x128xf32> -> vector<8x128xf32>
    %c0_4 = arith.constant 0 : index
    %c0_5 = arith.constant 0 : index
    %4 = vector.load %arg6[%c0_4, %c0_5] : memref<1x128xf32, #tpu.memory_space<vmem>>, vector<1x128xf32>
    %5 = vector.broadcast %4 : vector<1x128xf32> to vector<8x128xf32>
    %6 = arith.addf %3, %5 : vector<8x128xf32>
    %7 = vector.shape_cast %6 : vector<8x128xf32> to vector<1x8x128xf32>
    %c0_6 = arith.constant 0 : index
    %c0_7 = arith.constant 0 : index
    %c0_8 = arith.constant 0 : index
    %8 = vector.load %arg9[%c0_6, %c0_7, %c0_8] : memref<1x8x128xf32, #tpu.memory_space<vmem>>, vector<1x8x128xf32>
    tpu.vector_store %arg9[%c0_6, %c0_7, %c0_8], %7 {strides = array<i32>} : memref<1x8x128xf32, #tpu.memory_space<vmem>>, vector<1x8x128xf32>,
    %c0_9 = arith.constant 0 : index
    %c0_10 = arith.constant 0 : index
    %c0_11 = arith.constant 0 : index
    %9 = vector.load %arg2[%c0_9, %c0_10, %c0_11] : memref<1x8x128xf32, #tpu.memory_space<vmem>>, vector<1x8x128xf32>
    %10 = vector.shape_cast %9 : vector<1x8x128xf32> to vector<8x128xf32>
    %c0_12 = arith.constant 0 : index
    %c0_13 = arith.constant 0 : index
    %11 = vector.load %arg5[%c0_12, %c0_13] : memref<128x128xf32, #tpu.memory_space<vmem>>, vector<128x128xf32>
    %cst_14 = arith.constant dense<0.000000e+00> : vector<8x128xf32>
    %12 = tpu.matmul %10, %11, %cst_14 {dimension_numbers = #tpu.dot_dimension_numbers<[1], [0], [0], [1], [0, 0, 1, 1], [], []>} : vector<8x128xf32>, vector<128x128xf32>, vector<8x128xf32> -> vector<8x128xf32>
    %13 = vector.shape_cast %12 : vector<8x128xf32> to vector<1x1x8x128xf32>
    %c0_15 = arith.constant 0 : index
    %c0_16 = arith.constant 0 : index
    %14 = vector.load %arg7[%c0_15, %c0_16] : memref<1x128xf32, #tpu.memory_space<vmem>>, vector<1x128xf32>
    %15 = vector.shape_cast %14 : vector<1x128xf32> to vector<1x1x1x128xf32>
    %c0_i32 = arith.constant 0 : i32
    %c1_i32 = arith.constant 1 : i32
    %16 = arith.muli %c0_i32, %c1_i32 : i32
    %c0_i32_17 = arith.constant 0 : i32
    %17 = arith.addi %c0_i32_17, %16 : i32
    %c8_i32 = arith.constant 8 : i32
    %18 = arith.muli %17, %c8_i32 : i32
    %19 = tpu.assume_multiple %18, 8 : i32
    %c0_18 = arith.constant 0 : index
    %20 = arith.index_cast %19 : i32 to index
    %c0_19 = arith.constant 0 : index
    %21 = vector.load %arg9[%c0_18, %20, %c0_19] : memref<1x8x128xf32, #tpu.memory_space<vmem>>, vector<1x8x128xf32>
    %22 = vector.shape_cast %21 : vector<1x8x128xf32> to vector<1x8x1x128xf32>
    %23 = vector.broadcast %22 : vector<1x8x1x128xf32> to vector<1x8x8x128xf32>
    %24 = vector.broadcast %13 : vector<1x1x8x128xf32> to vector<1x8x8x128xf32>
    %25 = arith.addf %23, %24 : vector<1x8x8x128xf32>
    %cst_20 = arith.constant 0.000000e+00 : f32
    %26 = vector.broadcast %cst_20 : f32 to vector<1x8x8x128xf32>
    %27 = arith.maximumf %25, %26 : vector<1x8x8x128xf32>
    %28 = vector.broadcast %15 : vector<1x1x1x128xf32> to vector<1x8x8x128xf32>
    %29 = arith.mulf %27, %28 : vector<1x8x8x128xf32>
    %cst_21 = arith.constant dense<0.000000e+00> : vector<1x8x8xf32>
    %30 = vector.multi_reduction <add>, %29, %cst_21 [3] : vector<1x8x8x128xf32> to vector<1x8x8xf32>
    %c0_22 = arith.constant 0 : index
    %31 = arith.index_cast %19 : i32 to index
    %c0_23 = arith.constant 0 : index
    %32 = vector.load %arg10[%c0_22, %31, %c0_23] : memref<1x8x8xf32, #tpu.memory_space<vmem>>, vector<1x8x8xf32>
    tpu.vector_store %arg10[%c0_22, %31, %c0_23], %30 {strides = array<i32>} : memref<1x8x8xf32, #tpu.memory_space<vmem>>, vector<1x8x8xf32>,
    %c1_i32_24 = arith.constant 1 : i32
    %c0_25 = arith.constant 0 : index
    %c0_26 = arith.constant 0 : index
    %c0_27 = arith.constant 0 : index
    %33 = vector.load %arg3[%c0_25, %c0_26, %c0_27] : memref<1x1x8xf32, #tpu.memory_space<vmem>>, vector<1x1x8xf32>
    %cst_28 = arith.constant 0.000000e+00 : f32
    %34 = vector.broadcast %cst_28 : f32 to vector<1x1x8xf32>
    %35 = arith.cmpf one, %33, %34 : vector<1x1x8xf32>
    %c0_29 = arith.constant 0 : index
    %c0_30 = arith.constant 0 : index
    %c0_31 = arith.constant 0 : index
    %36 = vector.load %arg10[%c0_29, %c0_30, %c0_31] : memref<1x8x8xf32, #tpu.memory_space<vmem>>, vector<1x8x8xf32>
    %cst_32 = arith.constant -1.000000e+09 : f32
    %37 = vector.shape_cast %35 : vector<1x1x8xi1> to vector<1x1x8xi1>
    %38 = vector.broadcast %37 : vector<1x1x8xi1> to vector<1x8x8xi1>
    %39 = vector.broadcast %cst_32 : f32 to vector<1x8x8xf32>
    %40 = arith.select %38, %36, %39 : vector<1x8x8xi1>, vector<1x8x8xf32>
    %cst_33 = arith.constant dense<0xFF800000> : vector<1x8xf32>
    %41 = vector.multi_reduction <maximumf>, %40, %cst_33 [2] : vector<1x8x8xf32> to vector<1x8xf32>
    %42 = vector.shape_cast %41 : vector<1x8xf32> to vector<1x8x1xf32>
    %43 = vector.broadcast %42 : vector<1x8x1xf32> to vector<1x8x8xf32>
    %44 = arith.subf %40, %43 : vector<1x8x8xf32>
    %45 = math.exp %44 : vector<1x8x8xf32>
    %cst_34 = arith.constant dense<0.000000e+00> : vector<1x8xf32>
    %46 = vector.multi_reduction <add>, %45, %cst_34 [2] : vector<1x8x8xf32> to vector<1x8xf32>
    %47 = vector.shape_cast %46 : vector<1x8xf32> to vector<1x8x1xf32>
    %48 = vector.broadcast %47 : vector<1x8x1xf32> to vector<1x8x8xf32>
    %49 = arith.divf %45, %48 : vector<1x8x8xf32>
    %c0_35 = arith.constant 0 : index
    %c0_36 = arith.constant 0 : index
    %c0_37 = arith.constant 0 : index
    %50 = vector.load %arg2[%c0_35, %c0_36, %c0_37] : memref<1x8x128xf32, #tpu.memory_space<vmem>>, vector<1x8x128xf32>
    "tpu.trace_start"() <{level = 10 : i32, message = "bnh,bhd->bnd"}> : () -> ()
    %cst_38 = arith.constant dense<0.000000e+00> : vector<1x8x128xf32>
    %51 = tpu.matmul %49, %50, %cst_38 {dimension_numbers = #tpu.dot_dimension_numbers<[2], [1], [1], [2], [0, 0, 0, 1, 1, 2], [0], [0]>} : vector<1x8x8xf32>, vector<1x8x128xf32>, vector<1x8x128xf32> -> vector<1x8x128xf32>
    "tpu.trace_stop"() : () -> ()
    %c0_39 = arith.constant 0 : index
    %c0_40 = arith.constant 0 : index
    %c0_41 = arith.constant 0 : index
    %52 = vector.load %arg8[%c0_39, %c0_40, %c0_41] : memref<1x8x128xf32, #tpu.memory_space<vmem>>, vector<1x8x128xf32>
    tpu.vector_store %arg8[%c0_39, %c0_40, %c0_41], %51 {strides = array<i32>} : memref<1x8x128xf32, #tpu.memory_space<vmem>>, vector<1x8x128xf32>,
    return
  }
  func.func @transform_0(%arg0: i32) -> (i32, i32, i32) {
    %c0_i32 = arith.constant 0 : i32
    %c0_i32_0 = arith.constant 0 : i32
    %c0_i32_1 = arith.constant 0 : i32
    return %arg0, %c0_i32, %c0_i32_0 : i32, i32, i32
  }
  func.func @transform_1(%arg0: i32) -> (i32, i32, i32) {
    %c0_i32 = arith.constant 0 : i32
    %c0_i32_0 = arith.constant 0 : i32
    %c0_i32_1 = arith.constant 0 : i32
    return %arg0, %c0_i32, %c0_i32_0 : i32, i32, i32
  }
  func.func @transform_2(%arg0: i32) -> (i32, i32, i32) {
    %c0_i32 = arith.constant 0 : i32
    %c0_i32_0 = arith.constant 0 : i32
    %c0_i32_1 = arith.constant 0 : i32
    return %arg0, %c0_i32, %c0_i32_0 : i32, i32, i32
  }
  func.func @transform_3(%arg0: i32) -> (i32, i32) {
    %c0_i32 = arith.constant 0 : i32
    %c0_i32_0 = arith.constant 0 : i32
    %c0_i32_1 = arith.constant 0 : i32
    return %c0_i32, %c0_i32_0 : i32, i32
  }
  func.func @transform_4(%arg0: i32) -> (i32, i32) {
    %c0_i32 = arith.constant 0 : i32
    %c0_i32_0 = arith.constant 0 : i32
    %c0_i32_1 = arith.constant 0 : i32
    return %c0_i32, %c0_i32_0 : i32, i32
  }
  func.func @transform_5(%arg0: i32) -> (i32, i32) {
    %c0_i32 = arith.constant 0 : i32
    %c0_i32_0 = arith.constant 0 : i32
    %c0_i32_1 = arith.constant 0 : i32
    return %c0_i32, %c0_i32_0 : i32, i32
  }
  func.func @transform_6(%arg0: i32) -> (i32, i32) {
    %c0_i32 = arith.constant 0 : i32
    %c0_i32_0 = arith.constant 0 : i32
    %c0_i32_1 = arith.constant 0 : i32
    return %c0_i32, %c0_i32_0 : i32, i32
  }
  func.func @transform_7(%arg0: i32) -> (i32, i32, i32) {
    %c0_i32 = arith.constant 0 : i32
    %c0_i32_0 = arith.constant 0 : i32
    %c0_i32_1 = arith.constant 0 : i32
    return %arg0, %c0_i32, %c0_i32_0 : i32, i32, i32
  }
}

</mosaic_0001>

<llo_original>
// kernel: tpu_custom_call.1
$region0: #{tpu_custom_call.1}
  #allocation0 [shape = 'u32[]', space=smem, size = 0x4, offset = 0x4, fixed_abs, tag = 'smem constant byte address 0x4 - core index']
  #allocation1 [shape = 'u32[144,128]{1,0:T(1,128)}', space=vmem, size = 0x12000, scoped, tag = 'internal scratch']
  #allocation2 [shape = 'f32[1,8,128]{2,1,0:T(8,128)}', space=vmem, size = 0x1000, scoped, tag = 'scratch operand']
  #allocation3 [shape = 'f32[1,8,8]{2,1,0:T(8,128)}', space=vmem, size = 0x1000, scoped, tag = 'scratch operand']
  %s0 = inlined_call_operand.hbm [shape: f32[2,8,128], index: 0, kind: input, shape index: {}]
  %s1 = inlined_call_operand.hbm [shape: f32[2,8,128], index: 1, kind: input, shape index: {}]
  %s2 = inlined_call_operand.vmem [shape: f32[2,1,8], index: 2, kind: input, shape index: {}]
  %s3 = inlined_call_operand.hbm [shape: f32[128,128], index: 3, kind: input, shape index: {}]
  %s4 = inlined_call_operand.hbm [shape: f32[128,128], index: 4, kind: input, shape index: {}]
  %s5 = inlined_call_operand.vmem [shape: f32[1,128], index: 5, kind: input, shape index: {}]
  %s6 = inlined_call_operand.vmem [shape: f32[1,128], index: 6, kind: input, shape index: {}]
  %s7 = inlined_call_operand.hbm [shape: f32[2,8,128], index: 7, kind: output, shape index: {}]
  %s8 = sld [smem:[#allocation0]]
  $region77: #{tpu_custom_call.1} parent=0
    _
  %s10 = ssub.s32 1, %s8
  %s11 = scalar_select 0, %s10, %s8
  $region1: #{tpu_custom_call.1} parent=0
    #allocation4 [shape = 'u8[8192]{0}', space=vmem, size = 0x2000, scoped, tag = 'input window, operand 0']
    #allocation5 [shape = 's32[2]{0}', space=sflag, size = 0x8, scoped, tag = 'scoped memory for tpu_custom_call.1']
    #allocation6 [shape = 's32[2]{0}', space=sflag, size = 0x8, scoped, tag = 'scoped memory for tpu_custom_call.1']
    #allocation7 [shape = 'u8[8192]{0}', space=vmem, size = 0x2000, scoped, tag = 'input window, operand 1']
    #allocation8 [shape = 's32[2]{0}', space=sflag, size = 0x8, scoped, tag = 'scoped memory for tpu_custom_call.1']
    #allocation9 [shape = 'u8[65536]{0}', space=vmem, size = 0x10000, scoped, tag = 'input window, operand 3, single buffered']
    #allocation10 [shape = 'u8[65536]{0}', space=vmem, size = 0x10000, scoped, tag = 'input window, operand 4, single buffered']
    #allocation11 [shape = 's32[1]{0}', space=sflag, size = 0x4, scoped, tag = 'scoped memory for tpu_custom_call.1']
    #allocation12 [shape = 'u8[8192]{0}', space=vmem, size = 0x2000, scoped, tag = 'output window, operand 0']
    %12 = vsyncpa [#allocation5], 0
    %s13 = scalar_lea.sflag [#allocation5], 1
    %14 = vsyncpa %s13, 0
    %15 = vsyncpa [#allocation8], 0
    %s16 = scalar_lea.sflag [#allocation8], 1
    %17 = vsyncpa %s16, 0
    %18 = vsyncpa [#allocation11], 0
    %19 = vsyncpa [#allocation6], 0
    %s20 = scalar_lea.sflag [#allocation6], 1
    %21 = vsyncpa %s20, 0
    loop: start=0, step=1, limit=4
    $region2: #{tpu_custom_call.1} parent=1 // loop_pre_header
      _
    $region3: #{tpu_custom_call.1} parent=1 // loop_header
      %s23 = sphi 0, %s27
      %p24 = scmp.ge.s32.totalorder %s23, 4
      %s33 = sphi 0, %s35
      %s36 = sphi 0, %s33
      %s37 = sphi 0, %s36
      %s53 = sphi 0, %s37
      %s59 = sphi 0, %s61
      %s62 = sphi 0, %s59
      %s63 = sphi 0, %s62
      %s79 = sphi 0, %s63
      %s85 = sphi 0, %s87
      %s88 = sphi 0, %s85
      %s89 = sphi 0, %s88
      %s105 = sphi 0, %s89
      %s109 = sphi 0, %s109
      %s111 = sphi 0, %s109
      %s112 = sphi 0, %s111
      %s126 = sphi 0, %s112
      %s130 = sphi 0, %s130
      %s132 = sphi 0, %s130
      %s133 = sphi 0, %s132
      %s147 = sphi 0, %s133
      %s151 = sphi 0, %s151
      %s153 = sphi 0, %s151
      %s154 = sphi 0, %s153
      %s168 = sphi 0, %s154
      %s172 = sphi 0, %s172
      %s174 = sphi 0, %s172
      %s175 = sphi 0, %s174
      %s189 = sphi 0, %s175
      %s195 = sphi 0, %s197
      %s198 = sphi 0, %s195
      %s199 = sphi 0, %s198
      %s215 = sphi 0, %s199
    $region4: #{tpu_custom_call.1} parent=1 // loop_header_branch
      %26 = sbr.rel (%p24) target = $region8
    $region5: #{tpu_custom_call.1} parent=1 // loop_body
      %s28 = ssub.s32 %s23, 1
      %s29 = ssub.s32 %s23, 2
      %s30 = sadd.s32 %s23, 1
      %s31 = ssub.s32 %s23, %s30
      %p32 = scmp.eq.s32.totalorder %s31, 0
      %s34 = sadd.s32 %s33, 1
      %s35 = scalar_select %p32, %s33, %s34
      %p38 = pneg %p32
      %p39 = scmp.eq.s32.totalorder %s23, 1
      %p40 = por %p38, %p39
      %p41 = scmp.ne.s32.totalorder %s33, %s36
      %p42 = scmp.eq.s32.totalorder %s23, 0
      %p43 = por %p41, %p42
      %p44 = scmp.ne.s32.totalorder %s33, %s36
      %p45 = scmp.eq.s32.totalorder %s28, 1
      %p46 = por %p44, %p45
      %p47 = scmp.ne.s32.totalorder %s36, %s37
      %p48 = scmp.eq.s32.totalorder %s28, 0
      %p49 = por %p47, %p48
      %p50 = scmp.ne.s32.totalorder %s36, %s37
      %p51 = scmp.eq.s32.totalorder %s29, 1
      %p52 = por %p50, %p51
      %p54 = scmp.ne.s32.totalorder %s37, %s53
      %p55 = scmp.eq.s32.totalorder %s29, 0
      %p56 = por %p54, %p55
      %s57 = ssub.s32 %s23, %s30
      %p58 = scmp.eq.s32.totalorder %s57, 0
      %s60 = sadd.s32 %s59, 1
      %s61 = scalar_select %p58, %s59, %s60
      %p64 = pneg %p58
      %p65 = scmp.eq.s32.totalorder %s23, 1
      %p66 = por %p64, %p65
      %p67 = scmp.ne.s32.totalorder %s59, %s62
      %p68 = scmp.eq.s32.totalorder %s23, 0
      %p69 = por %p67, %p68
      %p70 = scmp.ne.s32.totalorder %s59, %s62
      %p71 = scmp.eq.s32.totalorder %s28, 1
      %p72 = por %p70, %p71
      %p73 = scmp.ne.s32.totalorder %s62, %s63
      %p74 = scmp.eq.s32.totalorder %s28, 0
      %p75 = por %p73, %p74
      %p76 = scmp.ne.s32.totalorder %s62, %s63
      %p77 = scmp.eq.s32.totalorder %s29, 1
      %p78 = por %p76, %p77
      %p80 = scmp.ne.s32.totalorder %s63, %s79
      %p81 = scmp.eq.s32.totalorder %s29, 0
      %p82 = por %p80, %p81
      %s83 = ssub.s32 %s23, %s30
      %p84 = scmp.eq.s32.totalorder %s83, 0
      %s86 = sadd.s32 %s85, 1
      %s87 = scalar_select %p84, %s85, %s86
      %p90 = pneg %p84
      %p91 = scmp.eq.s32.totalorder %s23, 1
      %p92 = por %p90, %p91
      %p93 = scmp.ne.s32.totalorder %s85, %s88
      %p94 = scmp.eq.s32.totalorder %s23, 0
      %p95 = por %p93, %p94
      %p96 = scmp.ne.s32.totalorder %s85, %s88
      %p97 = scmp.eq.s32.totalorder %s28, 1
      %p98 = por %p96, %p97
      %p99 = scmp.ne.s32.totalorder %s88, %s89
      %p100 = scmp.eq.s32.totalorder %s28, 0
      %p101 = por %p99, %p100
      %p102 = scmp.ne.s32.totalorder %s88, %s89
      %p103 = scmp.eq.s32.totalorder %s29, 1
      %p104 = por %p102, %p103
      %p106 = scmp.ne.s32.totalorder %s89, %s105
      %p107 = scmp.eq.s32.totalorder %s29, 0
      %p108 = por %p106, %p107
      %s110 = sadd.s32 %s109, 1
      %p113 = scmp.eq.s32.totalorder %s23, 1
      %p114 = scmp.ne.s32.totalorder %s109, %s111
      %p115 = scmp.eq.s32.totalorder %s23, 0
      %p116 = por %p114, %p115
      %p117 = scmp.ne.s32.totalorder %s109, %s111
      %p118 = scmp.eq.s32.totalorder %s28, 1
      %p119 = por %p117, %p118
      %p120 = scmp.ne.s32.totalorder %s111, %s112
      %p121 = scmp.eq.s32.totalorder %s28, 0
      %p122 = por %p120, %p121
      %p123 = scmp.ne.s32.totalorder %s111, %s112
      %p124 = scmp.eq.s32.totalorder %s29, 1
      %p125 = por %p123, %p124
      %p127 = scmp.ne.s32.totalorder %s112, %s126
      %p128 = scmp.eq.s32.totalorder %s29, 0
      %p129 = por %p127, %p128
      %s131 = sadd.s32 %s130, 1
      %p134 = scmp.eq.s32.totalorder %s23, 1
      %p135 = scmp.ne.s32.totalorder %s130, %s132
      %p136 = scmp.eq.s32.totalorder %s23, 0
      %p137 = por %p135, %p136
      %p138 = scmp.ne.s32.totalorder %s130, %s132
      %p139 = scmp.eq.s32.totalorder %s28, 1
      %p140 = por %p138, %p139
      %p141 = scmp.ne.s32.totalorder %s132, %s133
      %p142 = scmp.eq.s32.totalorder %s28, 0
      %p143 = por %p141, %p142
      %p144 = scmp.ne.s32.totalorder %s132, %s133
      %p145 = scmp.eq.s32.totalorder %s29, 1
      %p146 = por %p144, %p145
      %p148 = scmp.ne.s32.totalorder %s133, %s147
      %p149 = scmp.eq.s32.totalorder %s29, 0
      %p150 = por %p148, %p149
      %s152 = sadd.s32 %s151, 1
      %p155 = scmp.eq.s32.totalorder %s23, 1
      %p156 = scmp.ne.s32.totalorder %s151, %s153
      %p157 = scmp.eq.s32.totalorder %s23, 0
      %p158 = por %p156, %p157
      %p159 = scmp.ne.s32.totalorder %s151, %s153
      %p160 = scmp.eq.s32.totalorder %s28, 1
      %p161 = por %p159, %p160
      %p162 = scmp.ne.s32.totalorder %s153, %s154
      %p163 = scmp.eq.s32.totalorder %s28, 0
      %p164 = por %p162, %p163
      %p165 = scmp.ne.s32.totalorder %s153, %s154
      %p166 = scmp.eq.s32.totalorder %s29, 1
      %p167 = por %p165, %p166
      %p169 = scmp.ne.s32.totalorder %s154, %s168
      %p170 = scmp.eq.s32.totalorder %s29, 0
      %p171 = por %p169, %p170
      %s173 = sadd.s32 %s172, 1
      %p176 = scmp.eq.s32.totalorder %s23, 1
      %p177 = scmp.ne.s32.totalorder %s172, %s174
      %p178 = scmp.eq.s32.totalorder %s23, 0
      %p179 = por %p177, %p178
      %p180 = scmp.ne.s32.totalorder %s172, %s174
      %p181 = scmp.eq.s32.totalorder %s28, 1
      %p182 = por %p180, %p181
      %p183 = scmp.ne.s32.totalorder %s174, %s175
      %p184 = scmp.eq.s32.totalorder %s28, 0
      %p185 = por %p183, %p184
      %p186 = scmp.ne.s32.totalorder %s174, %s175
      %p187 = scmp.eq.s32.totalorder %s29, 1
      %p188 = por %p186, %p187
      %p190 = scmp.ne.s32.totalorder %s175, %s189
      %p191 = scmp.eq.s32.totalorder %s29, 0
      %p192 = por %p190, %p191
      %s193 = ssub.s32 %s23, %s30
      %p194 = scmp.eq.s32.totalorder %s193, 0
      %s196 = sadd.s32 %s195, 1
      %s197 = scalar_select %p194, %s195, %s196
      %p200 = pneg %p194
      %p201 = scmp.eq.s32.totalorder %s23, 1
      %p202 = por %p200, %p201
      %p203 = scmp.ne.s32.totalorder %s195, %s198
      %p204 = scmp.eq.s32.totalorder %s23, 0
      %p205 = por %p203, %p204
      %p206 = scmp.ne.s32.totalorder %s195, %s198
      %p207 = scmp.eq.s32.totalorder %s28, 1
      %p208 = por %p206, %p207
      %p209 = scmp.ne.s32.totalorder %s198, %s199
      %p210 = scmp.eq.s32.totalorder %s28, 0
      %p211 = por %p209, %p210
      %p212 = scmp.ne.s32.totalorder %s198, %s199
      %p213 = scmp.eq.s32.totalorder %s29, 1
      %p214 = por %p212, %p213
      %p216 = scmp.ne.s32.totalorder %s199, %s215
      %p217 = scmp.eq.s32.totalorder %s29, 0
      %p218 = por %p216, %p217
      %p219 = scmp.le.s32.totalorder 1, %s23
      %p220 = scmp.lt.s32.totalorder %s23, 3
      %p221 = pnand %p219, %p220
      %p222 = pneg %p221
      // Predicated region
      $region9: #{tpu_custom_call.1} parent=5 // pred_check
        _
      $region10: #{tpu_custom_call.1} parent=5 // pred_check_branch
        %224 = sbr.rel (%p221) target = $region12
      $region11: #{tpu_custom_call.1} parent=5 // pred_region
        %s225 = ssub.s32 %s23, 1
        // Predicated region
        $region13: #{tpu_custom_call.1} parent=11 // pred_check
          %p226 = pneg %p122
        $region14: #{tpu_custom_call.1} parent=11 // pred_check_branch
          %228 = sbr.rel (%p226) target = $region16
        $region15: #{tpu_custom_call.1} parent=11 // pred_region
          %s230 = ssub.s32 2048, 2048
          %231 = vsyncadd [#allocation8], %s230
          %s232 = sshll.u32 [#allocation9], 4
          %s233 = int_to_ptr.vmem [resolvable:$true] %s232
          %238 = dma.hbm_to_vmem [thread:$0]  %s3, 2048, %s233, [#allocation8], 128, 128, 8
        $region16: #{tpu_custom_call.1} parent=11 // pred_fallthru
          _
        // Predicated region
        $region17: #{tpu_custom_call.1} parent=11 // pred_check
          %p239 = pneg %p143
        $region18: #{tpu_custom_call.1} parent=11 // pred_check_branch
          %241 = sbr.rel (%p239) target = $region20
        $region19: #{tpu_custom_call.1} parent=11 // pred_region
          %s243 = ssub.s32 2048, 2048
          %244 = vsyncadd [#allocation11], %s243
          %s245 = sshll.u32 [#allocation10], 4
          %s246 = int_to_ptr.vmem [resolvable:$true] %s245
          %251 = dma.hbm_to_vmem [thread:$0]  %s4, 2048, %s246, [#allocation11], 128, 128, 8
        $region20: #{tpu_custom_call.1} parent=11 // pred_fallthru
          _
        // Predicated region
        $region21: #{tpu_custom_call.1} parent=11 // pred_check
          %p252 = pneg %p164
        $region22: #{tpu_custom_call.1} parent=11 // pred_check_branch
          %254 = sbr.rel (%p252) target = $region24
        $region23: #{tpu_custom_call.1} parent=11 // pred_region
          _
        $region24: #{tpu_custom_call.1} parent=11 // pred_fallthru
          _
        // Predicated region
        $region25: #{tpu_custom_call.1} parent=11 // pred_check
          %p255 = pneg %p185
        $region26: #{tpu_custom_call.1} parent=11 // pred_check_branch
          %257 = sbr.rel (%p255) target = $region28
        $region27: #{tpu_custom_call.1} parent=11 // pred_region
          _
        $region28: #{tpu_custom_call.1} parent=11 // pred_fallthru
          _
      $region12: #{tpu_custom_call.1} parent=5 // pred_fallthru
        _
      %p258 = scmp.lt.s32.totalorder %s23, 2
      // Predicated region
      $region29: #{tpu_custom_call.1} parent=5 // pred_check
        %p259 = pneg %p258
      $region30: #{tpu_custom_call.1} parent=5 // pred_check_branch
        %261 = sbr.rel (%p259) target = $region32
      $region31: #{tpu_custom_call.1} parent=5 // pred_region
        // Predicated region
        $region33: #{tpu_custom_call.1} parent=31 // pred_check
          %p262 = pneg %p43
        $region34: #{tpu_custom_call.1} parent=31 // pred_check_branch
          %264 = sbr.rel (%p262) target = $region36
        $region35: #{tpu_custom_call.1} parent=31 // pred_region
          %s265 = sand.u32 %s33, 1
          %s266 = scalar_lea.sflag [#allocation5], %s265
          %s267 = sand.u32 %s33, 1
          %s268 = smul.addr %s267, 8
          %s269 = scalar_lea.vmem [#allocation4], %s268
          %s271 = ssub.s32 128, 128
          %272 = vsyncadd %s266, %s271
          %s273 = smul.addr %s23, 128
          %s274 = scalar_lea.hbm %s0, %s273
          %s276 = sshll.u32 %s269, 4
          %s277 = int_to_ptr.vmem [resolvable:$true] %s276
          %279 = dma.hbm_to_vmem [thread:$0]  %s274, 128, %s277, %s266
        $region36: #{tpu_custom_call.1} parent=31 // pred_fallthru
          _
        // Predicated region
        $region37: #{tpu_custom_call.1} parent=31 // pred_check
          %p280 = pneg %p69
        $region38: #{tpu_custom_call.1} parent=31 // pred_check_branch
          %282 = sbr.rel (%p280) target = $region40
        $region39: #{tpu_custom_call.1} parent=31 // pred_region
          %s283 = sand.u32 %s23, 1
          %s284 = scalar_lea.sflag [#allocation8], %s283
          %s285 = sand.u32 %s59, 1
          %s286 = smul.addr %s285, 8
          %s287 = scalar_lea.vmem [#allocation7], %s286
          %s289 = ssub.s32 128, 128
          %290 = vsyncadd %s284, %s289
          %s291 = smul.addr %s23, 128
          %s292 = scalar_lea.hbm %s1, %s291
          %s294 = sshll.u32 %s287, 4
          %s295 = int_to_ptr.vmem [resolvable:$true] %s294
          %297 = dma.hbm_to_vmem [thread:$0]  %s292, 128, %s295, %s284
        $region40: #{tpu_custom_call.1} parent=31 // pred_fallthru
          _
        // Predicated region
        $region41: #{tpu_custom_call.1} parent=31 // pred_check
          %p298 = pneg %p95
        $region42: #{tpu_custom_call.1} parent=31 // pred_check_branch
          %300 = sbr.rel (%p298) target = $region44
        $region43: #{tpu_custom_call.1} parent=31 // pred_region
          %p301 = scmp.lt.s32.totalorder %s23, 1
          %s302 = scalar_select %p301, %s23, 1
          %s303 = scalar_lea.vmem %s2, %s302
        $region44: #{tpu_custom_call.1} parent=31 // pred_fallthru
          _
      $region32: #{tpu_custom_call.1} parent=5 // pred_fallthru
        _
      %p304 = scmp.le.s32.totalorder 1, %s23
      %p305 = scmp.lt.s32.totalorder %s23, 3
      %p306 = pnand %p304, %p305
      %p307 = pneg %p306
      // Predicated region
      $region45: #{tpu_custom_call.1} parent=5 // pred_check
        _
      $region46: #{tpu_custom_call.1} parent=5 // pred_check_branch
        %309 = sbr.rel (%p306) target = $region48
      $region47: #{tpu_custom_call.1} parent=5 // pred_region
        %s310 = ssub.s32 %s23, 1
        %s311 = sand.u32 %s36, 1
        %s312 = scalar_lea.sflag [#allocation5], %s311
        %s313 = sand.u32 %s36, 1
        %s314 = smul.addr %s313, 8
        %s315 = scalar_lea.vmem [#allocation4], %s314
        // Predicated region
        $region49: #{tpu_custom_call.1} parent=47 // pred_check
          %p316 = pneg %p49
        $region50: #{tpu_custom_call.1} parent=47 // pred_check_branch
          %318 = sbr.rel (%p316) target = $region52
        $region51: #{tpu_custom_call.1} parent=47 // pred_region
          %319 = dma.done %s312, 128
        $region52: #{tpu_custom_call.1} parent=47 // pred_fallthru
          _
        %s320 = sand.u32 %s28, 1
        %s321 = scalar_lea.sflag [#allocation8], %s320
        %s322 = sand.u32 %s62, 1
        %s323 = smul.addr %s322, 8
        %s324 = scalar_lea.vmem [#allocation7], %s323
        // Predicated region
        $region53: #{tpu_custom_call.1} parent=47 // pred_check
          %p325 = pneg %p75
        $region54: #{tpu_custom_call.1} parent=47 // pred_check_branch
          %327 = sbr.rel (%p325) target = $region56
        $region55: #{tpu_custom_call.1} parent=47 // pred_region
          %328 = dma.done %s321, 128
        $region56: #{tpu_custom_call.1} parent=47 // pred_fallthru
          _
        // Predicated region
        $region57: #{tpu_custom_call.1} parent=47 // pred_check
          %p329 = pneg %p122
        $region58: #{tpu_custom_call.1} parent=47 // pred_check_branch
          %331 = sbr.rel (%p329) target = $region60
        $region59: #{tpu_custom_call.1} parent=47 // pred_region
          %332 = dma.done [#allocation8], 2048
        $region60: #{tpu_custom_call.1} parent=47 // pred_fallthru
          _
        // Predicated region
        $region61: #{tpu_custom_call.1} parent=47 // pred_check
          %p333 = pneg %p143
        $region62: #{tpu_custom_call.1} parent=47 // pred_check_branch
          %335 = sbr.rel (%p333) target = $region64
        $region63: #{tpu_custom_call.1} parent=47 // pred_region
          %336 = dma.done [#allocation11], 2048
        $region64: #{tpu_custom_call.1} parent=47 // pred_fallthru
          _
        %s337 = sand.u32 %s36, 1
        %s338 = scalar_lea.sflag [#allocation5], %s337
        %s339 = sand.u32 %s36, 1
        %s340 = smul.addr %s339, 8
        %s341 = scalar_lea.vmem [#allocation4], %s340
        %p342 = pneg %p49
        %p343 = pneg %p46
        %s344 = sand.u32 %s28, 1
        %s345 = scalar_lea.sflag [#allocation8], %s344
        %s346 = sand.u32 %s62, 1
        %s347 = smul.addr %s346, 8
        %s348 = scalar_lea.vmem [#allocation7], %s347
        %p349 = pneg %p75
        %p350 = pneg %p72
        %p351 = scmp.lt.s32.totalorder %s28, 1
        %s352 = scalar_select %p351, %s28, 1
        %s353 = scalar_lea.vmem %s2, %s352
        %p354 = pneg %p101
        %p355 = pneg %p98
        %p356 = pneg %p122
        %p357 = pneg %p119
        %p358 = pneg %p143
        %p359 = pneg %p140
        %p360 = pneg %p164
        %p361 = pneg %p161
        %p362 = pneg %p185
        %p363 = pneg %p182
        %p364 = pneg %p211
        %p365 = pneg %p208
        %s366 = sand.u32 %s198, 1
        %s367 = scalar_lea.sflag [#allocation6], %s366
        %s368 = sand.u32 %s198, 1
        %s369 = smul.addr %s368, 8
        %s370 = scalar_lea.vmem [#allocation12], %s369
        %p371 = scmp.lt.s32.totalorder %s28, 1
        %s372 = scalar_select %p371, %s28, 1
        %s373 = scalar_lea.vmem %s2, %s372
        %v374 = vld [vmem:[%s315] sm:$0xff]
        %v375 = vld [vmem:[#allocation9] sm:$0xff]
        %v376 = vld [vmem:[#allocation9 + $0x8] sm:$0xff]
        %v377 = vld [vmem:[#allocation9 + $0x10] sm:$0xff]
        %v378 = vld [vmem:[#allocation9 + $0x18] sm:$0xff]
        %v379 = vld [vmem:[#allocation9 + $0x20] sm:$0xff]
        %v380 = vld [vmem:[#allocation9 + $0x28] sm:$0xff]
        %v381 = vld [vmem:[#allocation9 + $0x30] sm:$0xff]
        %v382 = vld [vmem:[#allocation9 + $0x38] sm:$0xff]
        %v383 = vld [vmem:[#allocation9 + $0x40] sm:$0xff]
        %v384 = vld [vmem:[#allocation9 + $0x48] sm:$0xff]
        %v385 = vld [vmem:[#allocation9 + $0x50] sm:$0xff]
        %v386 = vld [vmem:[#allocation9 + $0x58] sm:$0xff]
        %v387 = vld [vmem:[#allocation9 + $0x60] sm:$0xff]
        %v388 = vld [vmem:[#allocation9 + $0x68] sm:$0xff]
        %v389 = vld [vmem:[#allocation9 + $0x70] sm:$0xff]
        %v390 = vld [vmem:[#allocation9 + $0x78] sm:$0xff]
        %v391 = vld [vmem:[%s5] sm:$0x1]
        %v393 = vlaneseq
        %v394 = vshrl.u32 %v393, 7
        %v395 = vsub.s32 0, %v394
        %v396 = vrot.slane %v391, %v395
        %398 = vmatprep.subr.mxu0 0.0
        %399 = vmatpush1.msra.mxu0 %v375
        %400 = vmatprep.subr.mxu0 0.0
        %401 = vmatpush1.msra.mxu0 %v376
        %402 = vmatprep.subr.mxu0 0.0
        %403 = vmatpush1.msra.mxu0 %v377
        %404 = vmatprep.subr.mxu0 0.0
        %405 = vmatpush1.msra.mxu0 %v378
        %406 = vmatprep.subr.mxu0 0.0
        %407 = vmatpush1.msra.mxu0 %v379
        %408 = vmatprep.subr.mxu0 0.0
        %409 = vmatpush1.msra.mxu0 %v380
        %410 = vmatprep.subr.mxu0 0.0
        %411 = vmatpush1.msra.mxu0 %v381
        %412 = vmatprep.subr.mxu0 0.0
        %413 = vmatpush1.msra.mxu0 %v382
        %414 = vmatprep.subr.mxu0 0.0
        %415 = vmatpush1.msra.mxu0 %v383
        %416 = vmatprep.subr.mxu0 0.0
        %417 = vmatpush1.msra.mxu0 %v384
        %418 = vmatprep.subr.mxu0 0.0
        %419 = vmatpush1.msra.mxu0 %v385
        %420 = vmatprep.subr.mxu0 0.0
        %421 = vmatpush1.msra.mxu0 %v386
        %422 = vmatprep.subr.mxu0 0.0
        %423 = vmatpush1.msra.mxu0 %v387
        %424 = vmatprep.subr.mxu0 0.0
        %425 = vmatpush1.msra.mxu0 %v388
        %426 = vmatprep.subr.mxu0 0.0
        %427 = vmatpush1.msra.mxu0 %v389
        %428 = vmatprep.subr.mxu0 0.0
        %429 = vmatpush1.msra.mxu0 %v390
        %430 = vmatprep.subr.mxu0 0.0
        %431 = vmatpush1.msra.mxu0 0.0
        %432 = vmatprep.subr.mxu0 0.0
        %433 = vmatpush1.msra.mxu0 0.0
        %434 = vmatprep.subr.mxu0 0.0
        %435 = vmatpush1.msra.mxu0 0.0
        %436 = vmatprep.subr.mxu0 0.0
        %437 = vmatpush1.msra.mxu0 0.0
        %438 = vmatprep.subr.mxu0 0.0
        %439 = vmatpush1.msra.mxu0 0.0
        %440 = vmatprep.subr.mxu0 0.0
        %441 = vmatpush1.msra.mxu0 0.0
        %442 = vmatprep.subr.mxu0 0.0
        %443 = vmatpush1.msra.mxu0 0.0
        %444 = vmatprep.subr.mxu0 0.0
        %445 = vmatpush1.msra.mxu0 0.0
        %446 = vmatprep.subr.mxu0 0.0
        %447 = vmatpush1.msra.mxu0 0.0
        %448 = vmatprep.subr.mxu0 0.0
        %449 = vmatpush1.msra.mxu0 0.0
        %450 = vmatprep.subr.mxu0 0.0
        %451 = vmatpush1.msra.mxu0 0.0
        %452 = vmatprep.subr.mxu0 0.0
        %453 = vmatpush1.msra.mxu0 0.0
        %454 = vmatprep.subr.mxu0 0.0
        %455 = vmatpush1.msra.mxu0 0.0
        %456 = vmatprep.subr.mxu0 0.0
        %457 = vmatpush1.msra.mxu0 0.0
        %458 = vmatprep.subr.mxu0 0.0
        %459 = vmatpush1.msra.mxu0 0.0
        %460 = vmatprep.subr.mxu0 0.0
        %461 = vmatpush1.msra.mxu0 0.0
        %462 = vmatprep.mubr.f32.mxu0 0.0
        %463 = vmatmul.mubr.f32.gmra.mrb[0].mxu0 %v374
        %v464 = vpop.f32.mrb[0].mxu0
        %v465 = vadd.f32 %v396, %v464
        %v466 = vpop.f32.mrb[0].mxu0
        %467 = vdwg.mxu0
        %468 = vst [vmem:[#allocation2] sm:$0xff] %v465
        %v469 = vld [vmem:[%s324] sm:$0xff]
        %v470 = vld [vmem:[#allocation10] sm:$0xff]
        %v471 = vld [vmem:[#allocation10 + $0x8] sm:$0xff]
        %v472 = vld [vmem:[#allocation10 + $0x10] sm:$0xff]
        %v473 = vld [vmem:[#allocation10 + $0x18] sm:$0xff]
        %v474 = vld [vmem:[#allocation10 + $0x20] sm:$0xff]
        %v475 = vld [vmem:[#allocation10 + $0x28] sm:$0xff]
        %v476 = vld [vmem:[#allocation10 + $0x30] sm:$0xff]
        %v477 = vld [vmem:[#allocation10 + $0x38] sm:$0xff]
        %v478 = vld [vmem:[#allocation10 + $0x40] sm:$0xff]
        %v479 = vld [vmem:[#allocation10 + $0x48] sm:$0xff]
        %v480 = vld [vmem:[#allocation10 + $0x50] sm:$0xff]
        %v481 = vld [vmem:[#allocation10 + $0x58] sm:$0xff]
        %v482 = vld [vmem:[#allocation10 + $0x60] sm:$0xff]
        %v483 = vld [vmem:[#allocation10 + $0x68] sm:$0xff]
        %v484 = vld [vmem:[#allocation10 + $0x70] sm:$0xff]
        %v485 = vld [vmem:[#allocation10 + $0x78] sm:$0xff]
        %486 = vmatprep.subr.mxu0 0.0
        %487 = vmatpush1.msra.mxu0 %v470
        %488 = vmatprep.subr.mxu0 0.0
        %489 = vmatpush1.msra.mxu0 %v471
        %490 = vmatprep.subr.mxu0 0.0
        %491 = vmatpush1.msra.mxu0 %v472
        %492 = vmatprep.subr.mxu0 0.0
        %493 = vmatpush1.msra.mxu0 %v473
        %494 = vmatprep.subr.mxu0 0.0
        %495 = vmatpush1.msra.mxu0 %v474
        %496 = vmatprep.subr.mxu0 0.0
        %497 = vmatpush1.msra.mxu0 %v475
        %498 = vmatprep.subr.mxu0 0.0
        %499 = vmatpush1.msra.mxu0 %v476
        %500 = vmatprep.subr.mxu0 0.0
        %501 = vmatpush1.msra.mxu0 %v477
        %502 = vmatprep.subr.mxu0 0.0
        %503 = vmatpush1.msra.mxu0 %v478
        %504 = vmatprep.subr.mxu0 0.0
        %505 = vmatpush1.msra.mxu0 %v479
        %506 = vmatprep.subr.mxu0 0.0
        %507 = vmatpush1.msra.mxu0 %v480
        %508 = vmatprep.subr.mxu0 0.0
        %509 = vmatpush1.msra.mxu0 %v481
        %510 = vmatprep.subr.mxu0 0.0
        %511 = vmatpush1.msra.mxu0 %v482
        %512 = vmatprep.subr.mxu0 0.0
        %513 = vmatpush1.msra.mxu0 %v483
        %514 = vmatprep.subr.mxu0 0.0
        %515 = vmatpush1.msra.mxu0 %v484
        %516 = vmatprep.subr.mxu0 0.0
        %517 = vmatpush1.msra.mxu0 %v485
        %518 = vmatprep.subr.mxu0 0.0
        %519 = vmatpush1.msra.mxu0 0.0
        %520 = vmatprep.subr.mxu0 0.0
        %521 = vmatpush1.msra.mxu0 0.0
        %522 = vmatprep.subr.mxu0 0.0
        %523 = vmatpush1.msra.mxu0 0.0
        %524 = vmatprep.subr.mxu0 0.0
        %525 = vmatpush1.msra.mxu0 0.0
        %526 = vmatprep.subr.mxu0 0.0
        %527 = vmatpush1.msra.mxu0 0.0
        %528 = vmatprep.subr.mxu0 0.0
        %529 = vmatpush1.msra.mxu0 0.0
        %530 = vmatprep.subr.mxu0 0.0
        %531 = vmatpush1.msra.mxu0 0.0
        %532 = vmatprep.subr.mxu0 0.0
        %533 = vmatpush1.msra.mxu0 0.0
        %534 = vmatprep.subr.mxu0 0.0
        %535 = vmatpush1.msra.mxu0 0.0
        %536 = vmatprep.subr.mxu0 0.0
        %537 = vmatpush1.msra.mxu0 0.0
        %538 = vmatprep.subr.mxu0 0.0
        %539 = vmatpush1.msra.mxu0 0.0
        %540 = vmatprep.subr.mxu0 0.0
        %541 = vmatpush1.msra.mxu0 0.0
        %542 = vmatprep.subr.mxu0 0.0
        %543 = vmatpush1.msra.mxu0 0.0
        %544 = vmatprep.subr.mxu0 0.0
        %545 = vmatpush1.msra.mxu0 0.0
        %546 = vmatprep.subr.mxu0 0.0
        %547 = vmatpush1.msra.mxu0 0.0
        %548 = vmatprep.subr.mxu0 0.0
        %549 = vmatpush1.msra.mxu0 0.0
        %550 = vmatprep.mubr.f32.mxu0 0.0
        %551 = vmatmul.mubr.f32.gmra.mrb[0].mxu0 %v469
        %v552 = vpop.f32.mrb[0].mxu0
        %v553 = vadd.f32 0.0, %v552
        %v554 = vpop.f32.mrb[0].mxu0
        %555 = vdwg.mxu0
        %v556 = vld [vmem:[%s6] sm:$0x1]
        %v557 = vld [vmem:[#allocation2] sm:$0xff]
        %v559 = vcombine.high %v557, %v557
        %v561 = vunpack.c.l.s4 1966171168
        %v562 = vunpack.c.0.s8 %v561
        %v563 = vlaneseq
        %v564 = vshrl.u32 %v563, 7
        %v565 = vsub.s32 %v562, %v564
        %v566 = vrot.slane %v557, %v565
        %v568 = vunpack.c.l.s4 1966171168
        %v569 = vunpack.c.0.s8 %v568
        %v570 = vlaneseq
        %v571 = vshrl.u32 %v570, 7
        %v572 = vsub.s32 %v569, %v571
        %v573 = vrot.slane %v559, %v572
        %v574 = vcombine.high %v566, %v566
        %v575 = vcombine.high %v573, %v573
        %v577 = vunpack.c.l.s4 1966171168
        %v578 = vunpack.c.0.s8 %v577
        %v579 = vlaneseq
        %v580 = vshrl.u32 %v579, 7
        %v581 = vsub.s32 %v578, %v580
        %v582 = vrot.slane %v566, %v581
        %v584 = vunpack.c.l.s4 1966171168
        %v585 = vunpack.c.0.s8 %v584
        %v586 = vlaneseq
        %v587 = vshrl.u32 %v586, 7
        %v588 = vsub.s32 %v585, %v587
        %v589 = vrot.slane %v573, %v588
        %v591 = vunpack.c.l.s4 1966171168
        %v592 = vunpack.c.0.s8 %v591
        %v593 = vlaneseq
        %v594 = vshrl.u32 %v593, 7
        %v595 = vsub.s32 %v592, %v594
        %v596 = vrot.slane %v574, %v595
        %v598 = vunpack.c.l.s4 1966171168
        %v599 = vunpack.c.0.s8 %v598
        %v600 = vlaneseq
        %v601 = vshrl.u32 %v600, 7
        %v602 = vsub.s32 %v599, %v601
        %v603 = vrot.slane %v575, %v602
        %v604 = vcombine.high %v582, %v582
        %v605 = vcombine.high %v589, %v589
        %v606 = vcombine.high %v596, %v596
        %v607 = vcombine.high %v603, %v603
        %v608 = vlaneseq
        %v609 = vshrl.u32 %v608, 7
        %v610 = vsub.s32 0, %v609
        %v611 = vrot.slane %v582, %v610
        %v612 = vlaneseq
        %v613 = vshrl.u32 %v612, 7
        %v614 = vsub.s32 0, %v613
        %v615 = vrot.slane %v596, %v614
        %v616 = vlaneseq
        %v617 = vshrl.u32 %v616, 7
        %v618 = vsub.s32 0, %v617
        %v619 = vrot.slane %v604, %v618
        %v620 = vlaneseq
        %v621 = vshrl.u32 %v620, 7
        %v622 = vsub.s32 0, %v621
        %v623 = vrot.slane %v606, %v622
        %v624 = vlaneseq
        %v625 = vshrl.u32 %v624, 7
        %v626 = vsub.s32 0, %v625
        %v627 = vrot.slane %v589, %v626
        %v628 = vlaneseq
        %v629 = vshrl.u32 %v628, 7
        %v630 = vsub.s32 0, %v629
        %v631 = vrot.slane %v603, %v630
        %v632 = vlaneseq
        %v633 = vshrl.u32 %v632, 7
        %v634 = vsub.s32 0, %v633
        %v635 = vrot.slane %v605, %v634
        %v636 = vlaneseq
        %v637 = vshrl.u32 %v636, 7
        %v638 = vsub.s32 0, %v637
        %v639 = vrot.slane %v607, %v638
        %v648 = vadd.f32 %v611, %v553
        %v649 = vadd.f32 %v615, %v553
        %v650 = vadd.f32 %v619, %v553
        %v651 = vadd.f32 %v623, %v553
        %v652 = vadd.f32 %v627, %v553
        %v653 = vadd.f32 %v631, %v553
        %v654 = vadd.f32 %v635, %v553
        %v655 = vadd.f32 %v639, %v553
        %v656 = vmax.f32 %v648, 0.0
        %v657 = vmax.f32 %v649, 0.0
        %v658 = vmax.f32 %v650, 0.0
        %v659 = vmax.f32 %v651, 0.0
        %v660 = vmax.f32 %v652, 0.0
        %v661 = vmax.f32 %v653, 0.0
        %v662 = vmax.f32 %v654, 0.0
        %v663 = vmax.f32 %v655, 0.0
        %v665 = vlaneseq
        %v666 = vshrl.u32 %v665, 7
        %v667 = vsub.s32 0, %v666
        %v668 = vrot.slane %v556, %v667
        %v670 = vmul.f32 %v656, %v668
        %v671 = vmul.f32 %v657, %v668
        %v672 = vmul.f32 %v658, %v668
        %v673 = vmul.f32 %v659, %v668
        %v674 = vmul.f32 %v660, %v668
        %v675 = vmul.f32 %v661, %v668
        %v676 = vmul.f32 %v662, %v668
        %v677 = vmul.f32 %v663, %v668
        %678 = vadd.xlane.f32.xlu0 %v670
        %v679 = vpop.xlane.xlu0 %678
        %680 = vadd.xlane.f32.xlu0 %v671
        %v681 = vpop.xlane.xlu0 %680
        %682 = vadd.xlane.f32.xlu0 %v672
        %v683 = vpop.xlane.xlu0 %682
        %684 = vadd.xlane.f32.xlu0 %v673
        %v685 = vpop.xlane.xlu0 %684
        %686 = vadd.xlane.f32.xlu0 %v674
        %v687 = vpop.xlane.xlu0 %686
        %688 = vadd.xlane.f32.xlu0 %v675
        %v689 = vpop.xlane.xlu0 %688
        %690 = vadd.xlane.f32.xlu0 %v676
        %v691 = vpop.xlane.xlu0 %690
        %692 = vadd.xlane.f32.xlu0 %v677
        %v693 = vpop.xlane.xlu0 %692
        %v702 = vlaneseq
        %v703 = vand.u32 %v702, 127
        %v704 = vlaneseq
        %v705 = vshrl.u32 %v704, 7
        %v706 = vsub.s32 %v703, %v705
        %v707 = vrot.slane %v679, %v706
        %v708 = vlaneseq
        %v709 = vshrl.u32 %v708, 7
        %v710 = vsub.s32 %v703, %v709
        %v711 = vrot.slane %v681, %v710
        %v712 = vlaneseq
        %v713 = vshrl.u32 %v712, 7
        %v714 = vsub.s32 %v703, %v713
        %v715 = vrot.slane %v683, %v714
        %v716 = vlaneseq
        %v717 = vshrl.u32 %v716, 7
        %v718 = vsub.s32 %v703, %v717
        %v719 = vrot.slane %v685, %v718
        %v720 = vlaneseq
        %v721 = vshrl.u32 %v720, 7
        %v722 = vsub.s32 %v703, %v721
        %v723 = vrot.slane %v687, %v722
        %v724 = vlaneseq
        %v725 = vshrl.u32 %v724, 7
        %v726 = vsub.s32 %v703, %v725
        %v727 = vrot.slane %v689, %v726
        %v728 = vlaneseq
        %v729 = vshrl.u32 %v728, 7
        %v730 = vsub.s32 %v703, %v729
        %v731 = vrot.slane %v691, %v730
        %v732 = vlaneseq
        %v733 = vshrl.u32 %v732, 7
        %v734 = vsub.s32 %v703, %v733
        %v735 = vrot.slane %v693, %v734
        %vm736 = vcmask 1041409
        %v737 = vsel %vm736, %v711, %v707
        %vm738 = vcmask 1042434
        %v739 = vsel %vm738, %v715, %v737
        %vm740 = vcmask 1043459
        %v741 = vsel %vm740, %v719, %v739
        %vm742 = vcmask 1044484
        %v743 = vsel %vm742, %v723, %v741
        %vm744 = vcmask 1045509
        %v745 = vsel %vm744, %v727, %v743
        %vm746 = vcmask 1046534
        %v747 = vsel %vm746, %v731, %v745
        %vm748 = vcmask 1047559
        %v749 = vsel %vm748, %v735, %v747
        %vm751 = vcmask 64512
        %752 = vst.msk [vmem:[#allocation3] sm:$0xff] %vm751, %v749
        %v753 = vld [vmem:[%s373] sm:$0x1]
        %vm754 = vcmp.ne.f32.partialorder %v753, 0.0
        %v755 = vld [vmem:[#allocation3] sm:$0xff]
        %v756 = vsel %vm754, 1, 0
        %v757 = vlaneseq
        %v758 = vshrl.u32 %v757, 7
        %v759 = vsub.s32 0, %v758
        %v760 = vrot.slane %v756, %v759
        %vm761 = vcmp.eq.s32.totalorder %v760, 1
        %v762 = vsel %vm761, %v755, -1e+09
        %v763 = vsel %vm751, %v762, -inf
        %764 = vmax.xlane.f32.xlu0 %v763
        %v765 = vpop.xlane.xlu0 %764
        %v766 = vsub.f32 %v762, %v765
        %v767 = vmul.f32 %v766, 1.442695
        %v768 = vpow.pop %v767
        %v769 = vsel %vm751, %v768, 0.0
        %770 = vadd.xlane.f32.xlu0 %v769
        %v771 = vpop.xlane.xlu0 %770
        %v772 = vrcp.pop %v771
        %v773 = vmul.f32 %v768, %v772
        %v774 = vld [vmem:[%s324] sm:$0xff]
        %v776 = vsel %vm751, %v773, 0
        %778 = vmatprep.subr.mxu0 0.0
        %779 = vmatpush1.msra.mxu0 %v774
        %780 = vmatprep.subr.mxu0 0.0
        %781 = vmatpush1.msra.mxu0 0.0
        %782 = vmatprep.subr.mxu0 0.0
        %783 = vmatpush1.msra.mxu0 0.0
        %784 = vmatprep.subr.mxu0 0.0
        %785 = vmatpush1.msra.mxu0 0.0
        %786 = vmatprep.subr.mxu0 0.0
        %787 = vmatpush1.msra.mxu0 0.0
        %788 = vmatprep.subr.mxu0 0.0
        %789 = vmatpush1.msra.mxu0 0.0
        %790 = vmatprep.subr.mxu0 0.0
        %791 = vmatpush1.msra.mxu0 0.0
        %792 = vmatprep.subr.mxu0 0.0
        %793 = vmatpush1.msra.mxu0 0.0
        %794 = vmatprep.subr.mxu0 0.0
        %795 = vmatpush1.msra.mxu0 0.0
        %796 = vmatprep.subr.mxu0 0.0
        %797 = vmatpush1.msra.mxu0 0.0
        %798 = vmatprep.subr.mxu0 0.0
        %799 = vmatpush1.msra.mxu0 0.0
        %800 = vmatprep.subr.mxu0 0.0
        %801 = vmatpush1.msra.mxu0 0.0
        %802 = vmatprep.subr.mxu0 0.0
        %803 = vmatpush1.msra.mxu0 0.0
        %804 = vmatprep.subr.mxu0 0.0
        %805 = vmatpush1.msra.mxu0 0.0
        %806 = vmatprep.subr.mxu0 0.0
        %807 = vmatpush1.msra.mxu0 0.0
        %808 = vmatprep.subr.mxu0 0.0
        %809 = vmatpush1.msra.mxu0 0.0
        %810 = vmatprep.subr.mxu0 0.0
        %811 = vmatpush1.msra.mxu0 0.0
        %812 = vmatprep.subr.mxu0 0.0
        %813 = vmatpush1.msra.mxu0 0.0
        %814 = vmatprep.subr.mxu0 0.0
        %815 = vmatpush1.msra.mxu0 0.0
        %816 = vmatprep.subr.mxu0 0.0
        %817 = vmatpush1.msra.mxu0 0.0
        %818 = vmatprep.subr.mxu0 0.0
        %819 = vmatpush1.msra.mxu0 0.0
        %820 = vmatprep.subr.mxu0 0.0
        %821 = vmatpush1.msra.mxu0 0.0
        %822 = vmatprep.subr.mxu0 0.0
        %823 = vmatpush1.msra.mxu0 0.0
        %824 = vmatprep.subr.mxu0 0.0
        %825 = vmatpush1.msra.mxu0 0.0
        %826 = vmatprep.subr.mxu0 0.0
        %827 = vmatpush1.msra.mxu0 0.0
        %828 = vmatprep.subr.mxu0 0.0
        %829 = vmatpush1.msra.mxu0 0.0
        %830 = vmatprep.subr.mxu0 0.0
        %831 = vmatpush1.msra.mxu0 0.0
        %832 = vmatprep.subr.mxu0 0.0
        %833 = vmatpush1.msra.mxu0 0.0
        %834 = vmatprep.subr.mxu0 0.0
        %835 = vmatpush1.msra.mxu0 0.0
        %836 = vmatprep.subr.mxu0 0.0
        %837 = vmatpush1.msra.mxu0 0.0
        %838 = vmatprep.subr.mxu0 0.0
        %839 = vmatpush1.msra.mxu0 0.0
        %840 = vmatprep.subr.mxu0 0.0
        %841 = vmatpush1.msra.mxu0 0.0
        %842 = vmatprep.mubr.f32.mxu0 0.0
        %843 = vmatmul.mubr.f32.gmra.mrb[0].mxu0 %v776
        %v844 = vpop.f32.mrb[0].mxu0
        %v845 = vadd.f32 0.0, %v844
        %v846 = vpop.f32.mrb[0].mxu0
        %847 = vdwg.mxu0
        %848 = vst [vmem:[%s370] sm:$0xff] %v845
        %s849 = sand.u32 %s198, 1
        %s850 = scalar_lea.sflag [#allocation6], %s849
        %s851 = sand.u32 %s198, 1
        %s852 = smul.addr %s851, 8
        %s853 = scalar_lea.vmem [#allocation12], %s852
        // Predicated region
        $region65: #{tpu_custom_call.1} parent=47 // pred_check
          %p854 = pneg %p208
        $region66: #{tpu_custom_call.1} parent=47 // pred_check_branch
          %856 = sbr.rel (%p854) target = $region68
        $region67: #{tpu_custom_call.1} parent=47 // pred_region
          %s858 = ssub.s32 128, 128
          %859 = vsyncadd %s850, %s858
          %s860 = smul.addr %s28, 128
          %s861 = scalar_lea.hbm %s7, %s860
          %s863 = sshll.u32 %s853, 4
          %s864 = int_to_ptr.vmem [resolvable:$true] %s863
          %866 = dma.vmem_to_hbm [thread:$0]  %s864, 128, %s861, %s850
        $region68: #{tpu_custom_call.1} parent=47 // pred_fallthru
          _
      $region48: #{tpu_custom_call.1} parent=5 // pred_fallthru
        _
      %p867 = scmp.le.s32.totalorder 2, %s23
      // Predicated region
      $region69: #{tpu_custom_call.1} parent=5 // pred_check
        %p868 = pneg %p867
      $region70: #{tpu_custom_call.1} parent=5 // pred_check_branch
        %870 = sbr.rel (%p868) target = $region72
      $region71: #{tpu_custom_call.1} parent=5 // pred_region
        %s871 = ssub.s32 %s23, 2
        // Predicated region
        $region73: #{tpu_custom_call.1} parent=71 // pred_check
          %p872 = pneg %p214
        $region74: #{tpu_custom_call.1} parent=71 // pred_check_branch
          %874 = sbr.rel (%p872) target = $region76
        $region75: #{tpu_custom_call.1} parent=71 // pred_region
          %s875 = sand.u32 %s199, 1
          %s876 = scalar_lea.sflag [#allocation6], %s875
          %s877 = sand.u32 %s199, 1
          %s878 = smul.addr %s877, 8
          %s879 = scalar_lea.vmem [#allocation12], %s878
          %880 = dma.done %s876, 128
        $region76: #{tpu_custom_call.1} parent=71 // pred_fallthru
          _
      $region72: #{tpu_custom_call.1} parent=5 // pred_fallthru
        _
    $region6: #{tpu_custom_call.1} parent=1 // loop_footer
      %s27 = sadd.s32 1, %s23
    $region7: #{tpu_custom_call.1} parent=1 // loop_footer_branch
      %22 = sbr.rel target = $region3
    $region8: #{tpu_custom_call.1} parent=1 // loop_exit
      _
    %881 = vsyncpa [#allocation5], 1
    %s882 = scalar_lea.sflag [#allocation5], 1
    %883 = vsyncpa %s882, 1
    %884 = vsyncpa [#allocation8], 1
    %s885 = scalar_lea.sflag [#allocation8], 1
    %886 = vsyncpa %s885, 1
    %887 = vsyncpa [#allocation11], 1
    %888 = vsyncpa [#allocation6], 1
    %s889 = scalar_lea.sflag [#allocation6], 1
    %890 = vsyncpa %s889, 1

</llo_original>
